<compile_context>
chip_gen: v7x
topology: tpu7x:2x2x1
jax: 0.10.0
libtpu: 0.0.40
codegen_flags: <defaults>
</compile_context>

<pallas_src>
import functools

import jax
import jax.numpy as jnp
from jax.experimental import pallas as pl
from jax.experimental.pallas import tpu as pltpu


def _vad_projection_kernel(vad_ref, keys_m2t_ref, k2_ref, w2_ref, out_ref,
                           *, in_dim: int, num_keys: int):
    """One batch tile: nearest-key one-hot (VPU) + fused per-key projection (MXU)."""
    v = vad_ref[...]                                    # (TB, D)   f32

    # score[b, k] = ||key_k||^2 - 2 * <v_b, key_k>   (argmin == nearest key).
    # D is tiny (3), so do it on the VPU with broadcast FMAs — no MXU pass,
    # no extra weight load / result-FIFO pop per grid step.
    score = k2_ref[...]                                 # (1, K) -> broadcasts
    for d in range(in_dim):                             # static, unrolled
        score = score + v[:, d:d + 1] * keys_m2t_ref[d:d + 1, :]
    # score: (TB, K)

    # First-occurrence argmin over keys, expressed as a one-hot (TB, K)
    # (matches torch argmin-over-keys tie-breaking; no dynamic gather).
    minval = jnp.min(score, axis=-1, keepdims=True)                     # (TB, 1)
    k_iota = jax.lax.broadcasted_iota(jnp.int32, score.shape, 1)
    first = jnp.min(jnp.where(score <= minval, k_iota, jnp.int32(num_keys)),
                    axis=-1, keepdims=True)                             # (TB, 1)
    onehot = (k_iota == first).astype(jnp.float32)                      # (TB, K)

    # A[b, d*K + k] = v[b, d] * onehot[b, k]; out = A @ W2  (single MXU op,
    # lane-dense 768-wide store). Keep this fused form — do not split per key.
    a = jnp.concatenate([v[:, d:d + 1] * onehot for d in range(in_dim)],
                        axis=1)                                         # (TB, D*K)
    out_ref[...] = jnp.dot(a, w2_ref[...],
                           preferred_element_type=jnp.float32)          # (TB, O)


def _round_up(x: int, m: int) -> int:
    return ((x + m - 1) // m) * m


def make_vad_projection(keys_tbl, key_labels, w_blocks, block_b: int = 1024,
                        vmem_limit_bytes=None):
    """One-time host precompute of the lookup/projection tables.

    keys_tbl:   (K, D) f32 VAD key table
    key_labels: (K,)   i32 key -> class label
    w_blocks:   (C, O, D) f32 orthogonal blocks
    block_b:    batch tile (rows per grid step). 1024 fits the default scoped
                VMEM on v5e/v6e/v7x; sweep {512, 1024, 2048} per generation
                (2048 needs vmem_limit_bytes ~= 32-48 MB).
    Returns forward(vad: (B, D) f32) -> (B, O) f32.
    """
    K, D = keys_tbl.shape
    _, O, _ = w_blocks.shape

    keys_m2_t = jnp.asarray((-2.0 * keys_tbl).T, jnp.float32)            # (D, K)
    k2_row = jnp.sum(keys_tbl * keys_tbl, axis=-1,
                     dtype=jnp.float32)[None, :]                         # (1, K)
    w_per_key = w_blocks[key_labels]                                     # (K, O, D)
    # w2[d*K + k, o] = W[label_k, o, d]
    w2 = jnp.transpose(w_per_key, (2, 0, 1)).reshape(D * K, O)           # (D*K, O)
    w2 = jnp.asarray(w2, jnp.float32)

    kernel = functools.partial(_vad_projection_kernel, in_dim=D, num_keys=K)

    @jax.jit
    def forward(vad):
        B = vad.shape[0]
        # Largest useful tile: multiple of 8 rows, capped by block_b; for small
        # batches this collapses to a single unpadded grid step. No batch
        # padding and no post-kernel slice — the final partial tile's stores
        # are masked by Pallas, so HBM writeback is exactly (B, 768).
        tb = min(block_b, _round_up(B, 8))
        grid = (pl.cdiv(B, tb),)

        out = pl.pallas_call(
            kernel,
            out_shape=jax.ShapeDtypeStruct((B, O), jnp.float32),
            grid=grid,
            in_specs=[
                pl.BlockSpec((tb, D), lambda i: (i, 0)),       # vad tile
                pl.BlockSpec((D, K), lambda i: (0, 0)),        # block-invariant
                pl.BlockSpec((1, K), lambda i: (0, 0)),        # block-invariant
                pl.BlockSpec((D * K, O), lambda i: (0, 0)),    # block-invariant
            ],
            out_specs=pl.BlockSpec((tb, O), lambda i: (i, 0)),
            compiler_params=pltpu.CompilerParams(
                dimension_semantics=("parallel",),
                vmem_limit_bytes=vmem_limit_bytes),
        )(vad, keys_m2_t, k2_row, w2)
        return out

    return forward


def _reference_forward(vad, keys, key_labels, w_blocks):
    """Plain-JAX reference mirroring the PyTorch forward (nearest-key label,
    then v @ W[label].T). Note: near-tie keys may in principle resolve
    differently than the kernel's expanded-distance form; not hit here."""
    d = jnp.sum((vad[:, None, :] - keys[None, :, :]) ** 2, axis=-1)   # (B, K)
    labels = key_labels[jnp.argmin(d, axis=-1)]                       # (B,)
    w_sel = w_blocks[labels]                                          # (B, O, D)
    return jnp.einsum("bd,bod->bo", vad, w_sel)


if __name__ == "__main__":
    B, D, O, C, K = 8, 3, 768, 10, 16

    key = jax.random.PRNGKey(0)
    k_w, k_keys, k_vad = jax.random.split(key, 3)

    # Deterministic orthogonal blocks: (C, O, D) with orthonormal columns
    # (mirrors nn.init.orthogonal_ / the npz-loaded W matrices).
    raw = jax.random.normal(k_w, (C, O, D), dtype=jnp.float32)
    w_blocks = jax.vmap(lambda a: jnp.linalg.qr(a)[0])(raw)           # (C, O, D)

    # Deterministic VAD key table and key->class labels (stands in for the
    # pickled vad_to_label dict).
    keys_tbl = jax.random.uniform(k_keys, (K, D), jnp.float32, -1.0, 1.0)
    key_labels = jnp.arange(K, dtype=jnp.int32) % C

    # Input VAD batch: near the table keys so the lookup is meaningful.
    vad = keys_tbl[:B] + 0.01 * jax.random.normal(k_vad, (B, D), jnp.float32)

    forward = make_vad_projection(keys_tbl, key_labels, w_blocks)
    out = jax.block_until_ready(forward(vad))

    ref = _reference_forward(vad, keys_tbl, key_labels, w_blocks)
    assert out.shape == (B, O) and out.dtype == jnp.float32
    assert jnp.allclose(out, ref, atol=1e-5, rtol=1e-5), "mismatch vs reference"

    print("KERNEL_OK")
</pallas_src>

<mosaic_0001>
module attributes {stable_mosaic.version = 11 : i64} {
  func.func @_vad_projection_kernel(%arg0: i32, %arg1: memref<8x3xf32, #tpu.memory_space<vmem>>, %arg2: memref<3x16xf32, #tpu.memory_space<vmem>>, %arg3: memref<1x16xf32, #tpu.memory_space<vmem>>, %arg4: memref<48x768xf32, #tpu.memory_space<vmem>>, %arg5: memref<8x768xf32, #tpu.memory_space<vmem>>) attributes {dimension_semantics = [#tpu.dimension_semantics<parallel>], iteration_bounds = array<i64: 1>, scalar_prefetch = 0 : i64, scratch_operands = 0 : i64, tpu.core_type = #tpu.core_type<tc>, window_params = [{transform_indices = @transform_0, window_bounds = array<i64: 8, 3>}, {pipeline_mode = #tpu.pipeline_mode<synchronous>, transform_indices = @transform_1, window_bounds = array<i64: 3, 16>}, {pipeline_mode = #tpu.pipeline_mode<synchronous>, transform_indices = @transform_2, window_bounds = array<i64: 1, 16>}, {pipeline_mode = #tpu.pipeline_mode<synchronous>, transform_indices = @transform_3, window_bounds = array<i64: 48, 768>}, {transform_indices = @transform_4, window_bounds = array<i64: 8, 768>}]} {
    %c0 = arith.constant 0 : index
    %c0_0 = arith.constant 0 : index
    %0 = vector.load %arg1[%c0, %c0_0] : memref<8x3xf32, #tpu.memory_space<vmem>>, vector<8x3xf32>
    %c0_1 = arith.constant 0 : index
    %c0_2 = arith.constant 0 : index
    %1 = vector.load %arg3[%c0_1, %c0_2] : memref<1x16xf32, #tpu.memory_space<vmem>>, vector<1x16xf32>
    %2 = vector.extract_strided_slice %0 {offsets = [0, 0], sizes = [8, 1], strides = [1, 1]} : vector<8x3xf32> to vector<8x1xf32>
    %c0_3 = arith.constant 0 : index
    %c0_4 = arith.constant 0 : index
    %3 = vector.load %arg2[%c0_3, %c0_4] : memref<3x16xf32, #tpu.memory_space<vmem>>, vector<1x16xf32>
    %4 = vector.broadcast %2 : vector<8x1xf32> to vector<8x16xf32>
    %5 = vector.broadcast %3 : vector<1x16xf32> to vector<8x16xf32>
    %6 = arith.mulf %4, %5 : vector<8x16xf32>
    %7 = vector.broadcast %1 : vector<1x16xf32> to vector<8x16xf32>
    %8 = arith.addf %7, %6 : vector<8x16xf32>
    %9 = vector.extract_strided_slice %0 {offsets = [0, 1], sizes = [8, 1], strides = [1, 1]} : vector<8x3xf32> to vector<8x1xf32>
    %c1 = arith.constant 1 : index
    %c0_5 = arith.constant 0 : index
    %10 = vector.load %arg2[%c1, %c0_5] : memref<3x16xf32, #tpu.memory_space<vmem>>, vector<1x16xf32>
    %11 = vector.broadcast %9 : vector<8x1xf32> to vector<8x16xf32>
    %12 = vector.broadcast %10 : vector<1x16xf32> to vector<8x16xf32>
    %13 = arith.mulf %11, %12 : vector<8x16xf32>
    %14 = arith.addf %8, %13 : vector<8x16xf32>
    %15 = vector.extract_strided_slice %0 {offsets = [0, 2], sizes = [8, 1], strides = [1, 1]} : vector<8x3xf32> to vector<8x1xf32>
    %c2 = arith.constant 2 : index
    %c0_6 = arith.constant 0 : index
    %16 = vector.load %arg2[%c2, %c0_6] : memref<3x16xf32, #tpu.memory_space<vmem>>, vector<1x16xf32>
    %17 = vector.broadcast %15 : vector<8x1xf32> to vector<8x16xf32>
    %18 = vector.broadcast %16 : vector<1x16xf32> to vector<8x16xf32>
    %19 = arith.mulf %17, %18 : vector<8x16xf32>
    %20 = arith.addf %14, %19 : vector<8x16xf32>
    %cst = arith.constant dense<0x7F800000> : vector<8xf32>
    %21 = vector.multi_reduction <minimumf>, %20, %cst [1] : vector<8x16xf32> to vector<8xf32>
    %22 = vector.shape_cast %21 : vector<8xf32> to vector<8x1xf32>
    %23 = tpu.iota {dimensions = array<i32: 1>} : vector<8x16xi32>
    %24 = vector.broadcast %22 : vector<8x1xf32> to vector<8x16xf32>
    %25 = arith.cmpf ole, %20, %24 : vector<8x16xf32>
    %c16_i32 = arith.constant 16 : i32
    %26 = vector.broadcast %c16_i32 : i32 to vector<8x16xi32>
    %27 = arith.select %25, %23, %26 : vector<8x16xi1>, vector<8x16xi32>
    %cst_7 = arith.constant dense<2147483647> : vector<8xi32>
    %28 = vector.multi_reduction <minsi>, %27, %cst_7 [1] : vector<8x16xi32> to vector<8xi32>
    %29 = vector.shape_cast %28 : vector<8xi32> to vector<8x1xi32>
    %30 = vector.broadcast %29 : vector<8x1xi32> to vector<8x16xi32>
    %31 = arith.cmpi eq, %23, %30 : vector<8x16xi32>
    %32 = arith.extui %31 : vector<8x16xi1> to vector<8x16xi32>
    %33 = arith.sitofp %32 : vector<8x16xi32> to vector<8x16xf32>
    %34 = vector.extract_strided_slice %0 {offsets = [0, 0], sizes = [8, 1], strides = [1, 1]} : vector<8x3xf32> to vector<8x1xf32>
    %35 = vector.broadcast %34 : vector<8x1xf32> to vector<8x16xf32>
    %36 = arith.mulf %35, %33 : vector<8x16xf32>
    %37 = vector.extract_strided_slice %0 {offsets = [0, 1], sizes = [8, 1], strides = [1, 1]} : vector<8x3xf32> to vector<8x1xf32>
    %38 = vector.broadcast %37 : vector<8x1xf32> to vector<8x16xf32>
    %39 = arith.mulf %38, %33 : vector<8x16xf32>
    %40 = vector.extract_strided_slice %0 {offsets = [0, 2], sizes = [8, 1], strides = [1, 1]} : vector<8x3xf32> to vector<8x1xf32>
    %41 = vector.broadcast %40 : vector<8x1xf32> to vector<8x16xf32>
    %42 = arith.mulf %41, %33 : vector<8x16xf32>
    %43 = tpu.concatenate %36, %39, %42 in 1 : vector<8x16xf32>, vector<8x16xf32>, vector<8x16xf32> -> vector<8x48xf32>
    %c0_8 = arith.constant 0 : index
    %c0_9 = arith.constant 0 : index
    %44 = vector.load %arg4[%c0_8, %c0_9] : memref<48x768xf32, #tpu.memory_space<vmem>>, vector<48x768xf32>
    %cst_10 = arith.constant dense<0.000000e+00> : vector<8x768xf32>
    %45 = tpu.matmul %43, %44, %cst_10 {dimension_numbers = #tpu.dot_dimension_numbers<[1], [0], [0], [1], [0, 0, 1, 1], [], []>} : vector<8x48xf32>, vector<48x768xf32>, vector<8x768xf32> -> vector<8x768xf32>
    %c0_11 = arith.constant 0 : index
    %c0_12 = arith.constant 0 : index
    %46 = vector.load %arg5[%c0_11, %c0_12] : memref<8x768xf32, #tpu.memory_space<vmem>>, vector<8x768xf32>
    tpu.vector_store %arg5[%c0_11, %c0_12], %45 {strides = array<i32>} : memref<8x768xf32, #tpu.memory_space<vmem>>, vector<8x768xf32>,
    return
  }
  func.func @transform_0(%arg0: i32) -> (i32, i32) {
    %c0_i32 = arith.constant 0 : i32
    %c0_i32_0 = arith.constant 0 : i32
    return %arg0, %c0_i32 : i32, i32
  }
  func.func @transform_1(%arg0: i32) -> (i32, i32) {
    %c0_i32 = arith.constant 0 : i32
    %c0_i32_0 = arith.constant 0 : i32
    %c0_i32_1 = arith.constant 0 : i32
    return %c0_i32, %c0_i32_0 : i32, i32
  }
  func.func @transform_2(%arg0: i32) -> (i32, i32) {
    %c0_i32 = arith.constant 0 : i32
    %c0_i32_0 = arith.constant 0 : i32
    %c0_i32_1 = arith.constant 0 : i32
    return %c0_i32, %c0_i32_0 : i32, i32
  }
  func.func @transform_3(%arg0: i32) -> (i32, i32) {
    %c0_i32 = arith.constant 0 : i32
    %c0_i32_0 = arith.constant 0 : i32
    %c0_i32_1 = arith.constant 0 : i32
    return %c0_i32, %c0_i32_0 : i32, i32
  }
  func.func @transform_4(%arg0: i32) -> (i32, i32) {
    %c0_i32 = arith.constant 0 : i32
    %c0_i32_0 = arith.constant 0 : i32
    return %arg0, %c0_i32 : i32, i32
  }
}

</mosaic_0001>

<llo_original>
// kernel: forward.1
$region0: #{forward.1}
  #allocation0 [shape = 'u32[]', space=smem, size = 0x4, offset = 0x4, fixed_abs, tag = 'smem constant byte address 0x4 - core index']
  #allocation1 [shape = 'u32[144,128]{1,0:T(1,128)}', space=vmem, size = 0x12000, scoped, tag = 'internal scratch']
  %s0 = inlined_call_operand.vmem [shape: f32[8,3], index: 0, kind: input, shape index: {}]
  %s1 = inlined_call_operand.vmem [shape: f32[3,16], index: 1, kind: input, shape index: {}]
  %s2 = inlined_call_operand.vmem [shape: f32[1,16], index: 2, kind: input, shape index: {}]
  %s3 = inlined_call_operand.hbm [shape: f32[48,768], index: 3, kind: input, shape index: {}]
  %s4 = inlined_call_operand.hbm [shape: f32[8,768], index: 4, kind: output, shape index: {}]
  %s5 = sld [smem:[#allocation0]]
  $region30: #{forward.1} parent=0
    _
  %s7 = ssub.s32 1, %s5
  %s8 = scalar_select 0, %s7, %s5
  $region1: #{forward.1} parent=0
    #allocation2 [shape = 'u8[147456]{0}', space=vmem, size = 0x24000, scoped, tag = 'input window, operand 3, single buffered']
    #allocation3 [shape = 's32[1]{0}', space=sflag, size = 0x4, scoped, tag = 'scoped memory for forward.1']
    #allocation4 [shape = 's32[1]{0}', space=sflag, size = 0x4, scoped, tag = 'scoped memory for forward.1']
    #allocation5 [shape = 'u8[24576]{0}', space=vmem, size = 0x6000, scoped, tag = 'output window, operand 0, single buffered']
    %9 = vsyncpa [#allocation3], 0
    %10 = vsyncpa [#allocation4], 0
    // Predicated region
    $region2: #{forward.1} parent=1 // pred_check
      _
    $region3: #{forward.1} parent=1 // pred_check_branch
      %12 = sbr.rel (0) target = $region5
    $region4: #{forward.1} parent=1 // pred_region
      _
    $region5: #{forward.1} parent=1 // pred_fallthru
      _
    // Predicated region
    $region6: #{forward.1} parent=1 // pred_check
      _
    $region7: #{forward.1} parent=1 // pred_check_branch
      %14 = sbr.rel (0) target = $region9
    $region8: #{forward.1} parent=1 // pred_region
      _
    $region9: #{forward.1} parent=1 // pred_fallthru
      _
    // Predicated region
    $region10: #{forward.1} parent=1 // pred_check
      _
    $region11: #{forward.1} parent=1 // pred_check_branch
      %16 = sbr.rel (0) target = $region13
    $region12: #{forward.1} parent=1 // pred_region
      _
    $region13: #{forward.1} parent=1 // pred_fallthru
      _
    // Predicated region
    $region14: #{forward.1} parent=1 // pred_check
      _
    $region15: #{forward.1} parent=1 // pred_check_branch
      %18 = sbr.rel (0) target = $region17
    $region16: #{forward.1} parent=1 // pred_region
      %s20 = ssub.s32 4608, 4608
      %21 = vsyncadd [#allocation3], %s20
      %s22 = sshll.u32 [#allocation2], 4
      %s23 = int_to_ptr.vmem [resolvable:$true] %s22
      %28 = dma.hbm_to_vmem [thread:$0]  %s3, 4608, %s23, [#allocation3], 768, 768, 48
    $region17: #{forward.1} parent=1 // pred_fallthru
      _
    // Predicated region
    $region18: #{forward.1} parent=1 // pred_check
      _
    $region19: #{forward.1} parent=1 // pred_check_branch
      %30 = sbr.rel (0) target = $region21
    $region20: #{forward.1} parent=1 // pred_region
      %31 = dma.done [#allocation3], 4608
    $region21: #{forward.1} parent=1 // pred_fallthru
      _
    %v32 = vld [vmem:[%s0] sm:$0xff]
    %v33 = vld [vmem:[%s2] sm:$0x1]
    %v34 = vld [vmem:[%s1] sm:$0x1]
    %36 = vset.pattern.permute.xlu0 0
    %37 = vperm.xlu0 %36, %v32
    %v38 = vpop.permute.xlu0 %37
    %v40 = vlaneseq
    %v41 = vshrl.u32 %v40, 7
    %v42 = vsub.s32 0, %v41
    %v43 = vrot.slane %v34, %v42
    %v44 = vmul.f32 %v38, %v43
    %v46 = vlaneseq
    %v47 = vshrl.u32 %v46, 7
    %v48 = vsub.s32 0, %v47
    %v49 = vrot.slane %v33, %v48
    %v51 = vadd.f32 %v49, %v44
    %v52 = vld [vmem:[%s1 + $0x1] sm:$0x1]
    %53 = vset.pattern.permute.xlu0 1
    %54 = vperm.xlu0 %53, %v32
    %v55 = vpop.permute.xlu0 %54
    %v57 = vlaneseq
    %v58 = vshrl.u32 %v57, 7
    %v59 = vsub.s32 0, %v58
    %v60 = vrot.slane %v52, %v59
    %v61 = vmul.f32 %v55, %v60
    %v62 = vadd.f32 %v51, %v61
    %v63 = vld [vmem:[%s1 + $0x2] sm:$0x1]
    %64 = vset.pattern.permute.xlu0 2
    %65 = vperm.xlu0 %64, %v32
    %v66 = vpop.permute.xlu0 %65
    %v68 = vlaneseq
    %v69 = vshrl.u32 %v68, 7
    %v70 = vsub.s32 0, %v69
    %v71 = vrot.slane %v63, %v70
    %v72 = vmul.f32 %v66, %v71
    %v73 = vadd.f32 %v62, %v72
    %vm74 = vcmask 130048
    %v75 = vsel %vm74, %v73, inf
    %76 = vmin.xlane.f32.xlu0 %v75
    %v77 = vpop.xlane.xlu0 %76
    %v78 = vlaneseq
    %v79 = vand.u32 %v78, 127
    %vm80 = vcmp.le.f32.partialorder %v73, %v77
    %v81 = vsel %vm80, %v79, 16
    %v82 = vsel %vm74, %v81, 2147483647
    %v83 = vand.u32 %v82, 65535
    %v84 = vshra.s32 %v82, 16
    %v85 = vcvt.s32.f32 %v83
    %v86 = vcvt.s32.f32 %v84
    %87 = vmin.xlane.f32.xlu0 %v86
    %v88 = vpop.xlane.xlu0 %87
    %vm89 = vcmp.eq.f32.partialorder %v86, %v88
    %v90 = vsel %vm89, %v85, inf
    %91 = vmin.xlane.f32.xlu0 %v90
    %v92 = vpop.xlane.xlu0 %91
    %v93 = vcvt.f32.s32 %v92
    %v94 = vcvt.f32.s32 %v88
    %v95 = vshll.u32 %v94, 16
    %v96 = vadd.s32 %v95, %v93
    %vm97 = vcmp.eq.s32.totalorder %v79, %v96
    %v98 = vsel %vm97, 1, 0
    %v99 = vcvt.s32.f32 %v98
    %v100 = vmul.f32 %v38, %v99
    %v101 = vmul.f32 %v55, %v99
    %v102 = vmul.f32 %v66, %v99
    %104 = vrot.lane.b32.xlu0 %v101, 16
    %v105 = vpop.permute.xlu0 %104
    %108 = vrot.lane.b32.xlu0 %v102, 32
    %v109 = vpop.permute.xlu0 %108
    %v111 = vsel %vm74, %v100, %v105
    %vm112 = vcmask 261120
    %v113 = vsel %vm112, %v111, %v109
    %v114 = vld [vmem:[#allocation2] sm:$0xff]
    %v115 = vld [vmem:[#allocation2 + $0x8] sm:$0xff]
    %v116 = vld [vmem:[#allocation2 + $0x10] sm:$0xff]
    %v117 = vld [vmem:[#allocation2 + $0x18] sm:$0xff]
    %v118 = vld [vmem:[#allocation2 + $0x20] sm:$0xff]
    %v119 = vld [vmem:[#allocation2 + $0x28] sm:$0xff]
    %v120 = vld [vmem:[#allocation2 + $0x30] sm:$0xff]
    %v121 = vld [vmem:[#allocation2 + $0x38] sm:$0xff]
    %v122 = vld [vmem:[#allocation2 + $0x40] sm:$0xff]
    %v123 = vld [vmem:[#allocation2 + $0x48] sm:$0xff]
    %v124 = vld [vmem:[#allocation2 + $0x50] sm:$0xff]
    %v125 = vld [vmem:[#allocation2 + $0x58] sm:$0xff]
    %v126 = vld [vmem:[#allocation2 + $0x60] sm:$0xff]
    %v127 = vld [vmem:[#allocation2 + $0x68] sm:$0xff]
    %v128 = vld [vmem:[#allocation2 + $0x70] sm:$0xff]
    %v129 = vld [vmem:[#allocation2 + $0x78] sm:$0xff]
    %v130 = vld [vmem:[#allocation2 + $0x80] sm:$0xff]
    %v131 = vld [vmem:[#allocation2 + $0x88] sm:$0xff]
    %v132 = vld [vmem:[#allocation2 + $0x90] sm:$0xff]
    %v133 = vld [vmem:[#allocation2 + $0x98] sm:$0xff]
    %v134 = vld [vmem:[#allocation2 + $0xa0] sm:$0xff]
    %v135 = vld [vmem:[#allocation2 + $0xa8] sm:$0xff]
    %v136 = vld [vmem:[#allocation2 + $0xb0] sm:$0xff]
    %v137 = vld [vmem:[#allocation2 + $0xb8] sm:$0xff]
    %v138 = vld [vmem:[#allocation2 + $0xc0] sm:$0xff]
    %v139 = vld [vmem:[#allocation2 + $0xc8] sm:$0xff]
    %v140 = vld [vmem:[#allocation2 + $0xd0] sm:$0xff]
    %v141 = vld [vmem:[#allocation2 + $0xd8] sm:$0xff]
    %v142 = vld [vmem:[#allocation2 + $0xe0] sm:$0xff]
    %v143 = vld [vmem:[#allocation2 + $0xe8] sm:$0xff]
    %v144 = vld [vmem:[#allocation2 + $0xf0] sm:$0xff]
    %v145 = vld [vmem:[#allocation2 + $0xf8] sm:$0xff]
    %v146 = vld [vmem:[#allocation2 + $0x100] sm:$0xff]
    %v147 = vld [vmem:[#allocation2 + $0x108] sm:$0xff]
    %v148 = vld [vmem:[#allocation2 + $0x110] sm:$0xff]
    %v149 = vld [vmem:[#allocation2 + $0x118] sm:$0xff]
    %vm150 = vcmask 392192
    %v152 = vsel %vm150, %v113, 0
    %154 = vmatprep.subr.mxu0 %v115
    %155 = vmatpush1.msra.mxu0 %v114
    %156 = vmatprep.subr.mxu0 %v121
    %157 = vmatpush1.msra.mxu0 %v120
    %158 = vmatprep.subr.mxu0 %v127
    %159 = vmatpush1.msra.mxu0 %v126
    %160 = vmatprep.subr.mxu0 %v133
    %161 = vmatpush1.msra.mxu0 %v132
    %162 = vmatprep.subr.mxu0 %v139
    %163 = vmatpush1.msra.mxu0 %v138
    %164 = vmatprep.subr.mxu0 %v145
    %165 = vmatpush1.msra.mxu0 %v144
    %166 = vmatprep.subr.mxu0 0.0
    %167 = vmatpush1.msra.mxu0 0.0
    %168 = vmatprep.subr.mxu0 0.0
    %169 = vmatpush1.msra.mxu0 0.0
    %170 = vmatprep.subr.mxu0 0.0
    %171 = vmatpush1.msra.mxu0 0.0
    %172 = vmatprep.subr.mxu0 0.0
    %173 = vmatpush1.msra.mxu0 0.0
    %174 = vmatprep.subr.mxu0 0.0
    %175 = vmatpush1.msra.mxu0 0.0
    %176 = vmatprep.subr.mxu0 0.0
    %177 = vmatpush1.msra.mxu0 0.0
    %178 = vmatprep.subr.mxu0 0.0
    %179 = vmatpush1.msra.mxu0 0.0
    %180 = vmatprep.subr.mxu0 0.0
    %181 = vmatpush1.msra.mxu0 0.0
    %182 = vmatprep.subr.mxu0 0.0
    %183 = vmatpush1.msra.mxu0 0.0
    %184 = vmatprep.subr.mxu0 0.0
    %185 = vmatpush1.msra.mxu0 0.0
    %186 = vmatprep.subr.mxu0 0.0
    %187 = vmatpush1.msra.mxu0 0.0
    %188 = vmatprep.subr.mxu0 0.0
    %189 = vmatpush1.msra.mxu0 0.0
    %190 = vmatprep.subr.mxu0 0.0
    %191 = vmatpush1.msra.mxu0 0.0
    %192 = vmatprep.subr.mxu0 0.0
    %193 = vmatpush1.msra.mxu0 0.0
    %194 = vmatprep.subr.mxu0 0.0
    %195 = vmatpush1.msra.mxu0 0.0
    %196 = vmatprep.subr.mxu0 0.0
    %197 = vmatpush1.msra.mxu0 0.0
    %198 = vmatprep.subr.mxu0 0.0
    %199 = vmatpush1.msra.mxu0 0.0
    %200 = vmatprep.subr.mxu0 0.0
    %201 = vmatpush1.msra.mxu0 0.0
    %202 = vmatprep.subr.mxu0 0.0
    %203 = vmatpush1.msra.mxu0 0.0
    %204 = vmatprep.subr.mxu0 0.0
    %205 = vmatpush1.msra.mxu0 0.0
    %206 = vmatprep.subr.mxu0 0.0
    %207 = vmatpush1.msra.mxu0 0.0
    %208 = vmatprep.subr.mxu0 0.0
    %209 = vmatpush1.msra.mxu0 0.0
    %210 = vmatprep.subr.mxu0 0.0
    %211 = vmatpush1.msra.mxu0 0.0
    %212 = vmatprep.subr.mxu0 0.0
    %213 = vmatpush1.msra.mxu0 0.0
    %214 = vmatprep.subr.mxu0 0.0
    %215 = vmatpush1.msra.mxu0 0.0
    %216 = vmatprep.subr.mxu0 0.0
    %217 = vmatpush1.msra.mxu0 0.0
    %218 = vmatprep.mubr.f32.mxu0 0.0
    %219 = vmatmul.mubr.f32.gmra.mrb[0].mxu0 %v152
    %v220 = vpop.f32.mrb[0].mxu0
    %v221 = vadd.f32 0.0, %v220
    %v222 = vpop.f32.mrb[0].mxu0
    %v223 = vadd.f32 0.0, %v222
    %224 = vdwg.mxu0
    %225 = vmatprep.subr.mxu0 %v117
    %226 = vmatpush1.msra.mxu0 %v116
    %227 = vmatprep.subr.mxu0 %v123
    %228 = vmatpush1.msra.mxu0 %v122
    %229 = vmatprep.subr.mxu0 %v129
    %230 = vmatpush1.msra.mxu0 %v128
    %231 = vmatprep.subr.mxu0 %v135
    %232 = vmatpush1.msra.mxu0 %v134
    %233 = vmatprep.subr.mxu0 %v141
    %234 = vmatpush1.msra.mxu0 %v140
    %235 = vmatprep.subr.mxu0 %v147
    %236 = vmatpush1.msra.mxu0 %v146
    %237 = vmatprep.subr.mxu0 0.0
    %238 = vmatpush1.msra.mxu0 0.0
    %239 = vmatprep.subr.mxu0 0.0
    %240 = vmatpush1.msra.mxu0 0.0
    %241 = vmatprep.subr.mxu0 0.0
    %242 = vmatpush1.msra.mxu0 0.0
    %243 = vmatprep.subr.mxu0 0.0
    %244 = vmatpush1.msra.mxu0 0.0
    %245 = vmatprep.subr.mxu0 0.0
    %246 = vmatpush1.msra.mxu0 0.0
    %247 = vmatprep.subr.mxu0 0.0
    %248 = vmatpush1.msra.mxu0 0.0
    %249 = vmatprep.subr.mxu0 0.0
    %250 = vmatpush1.msra.mxu0 0.0
    %251 = vmatprep.subr.mxu0 0.0
    %252 = vmatpush1.msra.mxu0 0.0
    %253 = vmatprep.subr.mxu0 0.0
    %254 = vmatpush1.msra.mxu0 0.0
    %255 = vmatprep.subr.mxu0 0.0
    %256 = vmatpush1.msra.mxu0 0.0
    %257 = vmatprep.subr.mxu0 0.0
    %258 = vmatpush1.msra.mxu0 0.0
    %259 = vmatprep.subr.mxu0 0.0
    %260 = vmatpush1.msra.mxu0 0.0
    %261 = vmatprep.subr.mxu0 0.0
    %262 = vmatpush1.msra.mxu0 0.0
    %263 = vmatprep.subr.mxu0 0.0
    %264 = vmatpush1.msra.mxu0 0.0
    %265 = vmatprep.subr.mxu0 0.0
    %266 = vmatpush1.msra.mxu0 0.0
    %267 = vmatprep.subr.mxu0 0.0
    %268 = vmatpush1.msra.mxu0 0.0
    %269 = vmatprep.subr.mxu0 0.0
    %270 = vmatpush1.msra.mxu0 0.0
    %271 = vmatprep.subr.mxu0 0.0
    %272 = vmatpush1.msra.mxu0 0.0
    %273 = vmatprep.subr.mxu0 0.0
    %274 = vmatpush1.msra.mxu0 0.0
    %275 = vmatprep.subr.mxu0 0.0
    %276 = vmatpush1.msra.mxu0 0.0
    %277 = vmatprep.subr.mxu0 0.0
    %278 = vmatpush1.msra.mxu0 0.0
    %279 = vmatprep.subr.mxu0 0.0
    %280 = vmatpush1.msra.mxu0 0.0
    %281 = vmatprep.subr.mxu0 0.0
    %282 = vmatpush1.msra.mxu0 0.0
    %283 = vmatprep.subr.mxu0 0.0
    %284 = vmatpush1.msra.mxu0 0.0
    %285 = vmatprep.subr.mxu0 0.0
    %286 = vmatpush1.msra.mxu0 0.0
    %287 = vmatprep.subr.mxu0 0.0
    %288 = vmatpush1.msra.mxu0 0.0
    %289 = vmatprep.mubr.f32.mxu0 0.0
    %290 = vmatmul.mubr.f32.gmra.mrb[0].mxu0 %v152
    %v291 = vpop.f32.mrb[0].mxu0
    %v292 = vadd.f32 0.0, %v291
    %v293 = vpop.f32.mrb[0].mxu0
    %v294 = vadd.f32 0.0, %v293
    %295 = vdwg.mxu0
    %296 = vmatprep.subr.mxu0 %v119
    %297 = vmatpush1.msra.mxu0 %v118
    %298 = vmatprep.subr.mxu0 %v125
    %299 = vmatpush1.msra.mxu0 %v124
    %300 = vmatprep.subr.mxu0 %v131
    %301 = vmatpush1.msra.mxu0 %v130
    %302 = vmatprep.subr.mxu0 %v137
    %303 = vmatpush1.msra.mxu0 %v136
    %304 = vmatprep.subr.mxu0 %v143
    %305 = vmatpush1.msra.mxu0 %v142
    %306 = vmatprep.subr.mxu0 %v149
    %307 = vmatpush1.msra.mxu0 %v148
    %308 = vmatprep.subr.mxu0 0.0
    %309 = vmatpush1.msra.mxu0 0.0
    %310 = vmatprep.subr.mxu0 0.0
    %311 = vmatpush1.msra.mxu0 0.0
    %312 = vmatprep.subr.mxu0 0.0
    %313 = vmatpush1.msra.mxu0 0.0
    %314 = vmatprep.subr.mxu0 0.0
    %315 = vmatpush1.msra.mxu0 0.0
    %316 = vmatprep.subr.mxu0 0.0
    %317 = vmatpush1.msra.mxu0 0.0
    %318 = vmatprep.subr.mxu0 0.0
    %319 = vmatpush1.msra.mxu0 0.0
    %320 = vmatprep.subr.mxu0 0.0
    %321 = vmatpush1.msra.mxu0 0.0
    %322 = vmatprep.subr.mxu0 0.0
    %323 = vmatpush1.msra.mxu0 0.0
    %324 = vmatprep.subr.mxu0 0.0
    %325 = vmatpush1.msra.mxu0 0.0
    %326 = vmatprep.subr.mxu0 0.0
    %327 = vmatpush1.msra.mxu0 0.0
    %328 = vmatprep.subr.mxu0 0.0
    %329 = vmatpush1.msra.mxu0 0.0
    %330 = vmatprep.subr.mxu0 0.0
    %331 = vmatpush1.msra.mxu0 0.0
    %332 = vmatprep.subr.mxu0 0.0
    %333 = vmatpush1.msra.mxu0 0.0
    %334 = vmatprep.subr.mxu0 0.0
    %335 = vmatpush1.msra.mxu0 0.0
    %336 = vmatprep.subr.mxu0 0.0
    %337 = vmatpush1.msra.mxu0 0.0
    %338 = vmatprep.subr.mxu0 0.0
    %339 = vmatpush1.msra.mxu0 0.0
    %340 = vmatprep.subr.mxu0 0.0
    %341 = vmatpush1.msra.mxu0 0.0
    %342 = vmatprep.subr.mxu0 0.0
    %343 = vmatpush1.msra.mxu0 0.0
    %344 = vmatprep.subr.mxu0 0.0
    %345 = vmatpush1.msra.mxu0 0.0
    %346 = vmatprep.subr.mxu0 0.0
    %347 = vmatpush1.msra.mxu0 0.0
    %348 = vmatprep.subr.mxu0 0.0
    %349 = vmatpush1.msra.mxu0 0.0
    %350 = vmatprep.subr.mxu0 0.0
    %351 = vmatpush1.msra.mxu0 0.0
    %352 = vmatprep.subr.mxu0 0.0
    %353 = vmatpush1.msra.mxu0 0.0
    %354 = vmatprep.subr.mxu0 0.0
    %355 = vmatpush1.msra.mxu0 0.0
    %356 = vmatprep.subr.mxu0 0.0
    %357 = vmatpush1.msra.mxu0 0.0
    %358 = vmatprep.subr.mxu0 0.0
    %359 = vmatpush1.msra.mxu0 0.0
    %360 = vmatprep.mubr.f32.mxu0 0.0
    %361 = vmatmul.mubr.f32.gmra.mrb[0].mxu0 %v152
    %v362 = vpop.f32.mrb[0].mxu0
    %v363 = vadd.f32 0.0, %v362
    %v364 = vpop.f32.mrb[0].mxu0
    %v365 = vadd.f32 0.0, %v364
    %366 = vdwg.mxu0
    %367 = vst [vmem:[#allocation5] sm:$0xff] %v221
    %368 = vst [vmem:[#allocation5 + $0x8] sm:$0xff] %v223
    %369 = vst [vmem:[#allocation5 + $0x10] sm:$0xff] %v292
    %370 = vst [vmem:[#allocation5 + $0x18] sm:$0xff] %v294
    %371 = vst [vmem:[#allocation5 + $0x20] sm:$0xff] %v363
    %372 = vst [vmem:[#allocation5 + $0x28] sm:$0xff] %v365
    // Predicated region
    $region22: #{forward.1} parent=1 // pred_check
      _
    $region23: #{forward.1} parent=1 // pred_check_branch
      %374 = sbr.rel (0) target = $region25
    $region24: #{forward.1} parent=1 // pred_region
      %s376 = ssub.s32 768, 768
      %377 = vsyncadd [#allocation4], %s376
      %s379 = sshll.u32 [#allocation5], 4
      %s380 = int_to_ptr.vmem [resolvable:$true] %s379
      %382 = dma.vmem_to_hbm [thread:$0]  %s380, 768, %s4, [#allocation4]
    $region25: #{forward.1} parent=1 // pred_fallthru
      _
    // Predicated region
    $region26: #{forward.1} parent=1 // pred_check
      _
    $region27: #{forward.1} parent=1 // pred_check_branch
      %384 = sbr.rel (0) target = $region29
    $region28: #{forward.1} parent=1 // pred_region
      %385 = dma.done [#allocation4], 768
    $region29: #{forward.1} parent=1 // pred_fallthru
      _
    %386 = vsyncpa [#allocation3], 1
    %387 = vsyncpa [#allocation4], 1

</llo_original>
